<compile_context>
chip_gen: v6e
topology: v6e:2x2x1
jax: 0.10.0
libtpu: 0.0.40
codegen_flags: <defaults>
</compile_context>

<pallas_src>
import jax
import jax.numpy as jnp
from jax.experimental import pallas as pl
from jax.experimental.pallas import tpu as pltpu


# --------------------------------------------------------------------------
# Kernel
# --------------------------------------------------------------------------
def compine_kernel(x_ref, w_ref, b_ref, o_ref):
    h = o_ref.shape[-1]
    # One fused MXU matmul: (block_b, IN) @ (IN, 2H) with f32 accumulation.
    y = jnp.dot(x_ref[...], w_ref[...], preferred_element_type=jnp.float32)
    y = y + b_ref[...]                      # bias is kept f32 (no round-trip)
    g = y[:, :h]                            # gate pre-activation
    c = y[:, h:]                            # content pre-activation
    out = jax.nn.sigmoid(g) * jnp.maximum(c, 0.0)
    o_ref[...] = out.astype(o_ref.dtype)


# --------------------------------------------------------------------------
# Helpers
# --------------------------------------------------------------------------
def _round_up(x, m):
    return ((x + m - 1) // m) * m


def _vmem_budget_bytes():
    """~80% of this generation's VMEM capacity (v7x: 64 MiB, v5e/v6e: 128 MiB)."""
    try:
        cap = int(pltpu.get_tpu_info().vmem_capacity_bytes)
    except Exception:
        cap = 64 << 20  # conservative fallback (smallest generation, v7x)
    return int(cap * 0.8)


def pack_compine_params(wg, bg, wc, bc, param_dtype=None):
    """Pack the two Linear layers ONCE at setup time (not per forward call).

    wg, wc: (IN, H) weights already transposed (== PyTorch weight.T)
    bg, bc: (H,) biases
    Returns (w_packed (IN, 2H), b_packed (1, 2H) f32).
    """
    if param_dtype is not None:
        wg = wg.astype(param_dtype)
        wc = wc.astype(param_dtype)
    w = jnp.concatenate([wg, wc], axis=1)                        # (IN, 2H)
    b = jnp.concatenate([bg, bc], axis=0).astype(jnp.float32)    # (2H,) f32
    return w, b.reshape(1, -1)


# --------------------------------------------------------------------------
# Forward wrapper
# --------------------------------------------------------------------------
def compine_forward(x, w_packed, b_packed, *, block_b=None,
                    target_xtile_bytes=2 << 20, out_dtype=None):
    """sigmoid(x @ Wg + bg) * relu(x @ Wc + bc) using the packed [Wg|Wc] panel.

    x:        (B, IN) activations (streamed in its native dtype, no extra cast)
    w_packed: (IN, 2H) packed weights from pack_compine_params
    b_packed: (1, 2H) packed f32 bias
    Returns (B, H) in out_dtype (defaults to x.dtype).
    """
    B, IN = x.shape
    H2 = w_packed.shape[1]
    H = H2 // 2
    assert w_packed.shape[0] == IN and b_packed.shape == (1, H2)
    out_dtype = x.dtype if out_dtype is None else out_dtype

    x_isz = jnp.dtype(x.dtype).itemsize
    o_isz = jnp.dtype(out_dtype).itemsize
    w_bytes = IN * H2 * jnp.dtype(w_packed.dtype).itemsize
    b_bytes = H2 * 4

    budget = _vmem_budget_bytes()

    if block_b is None:
        # HBM-roofline tile: ~target_xtile_bytes of x per grid step so the
        # per-step DMA comfortably exceeds the ~0.35 us pipeline overhead.
        block_b = max(1024, min(8192, target_xtile_bytes // max(1, IN * x_isz)))
        block_b = _round_up(block_b, 8)

    # v7x megacore: keep at least 2 grid steps on the parallel axis so both
    # TensorCores (and the full shared HBM feed) are used.
    if B <= 2 * block_b:
        block_b = min(block_b, max(8, _round_up(pl.cdiv(B, 2), 8)))

    def needed(bb):
        # double-buffered x & out tiles + (conservatively double-buffered) params
        return 2 * bb * IN * x_isz + 2 * bb * H * o_isz + 2 * (w_bytes + b_bytes)

    # Shrink the tile if it would blow the generation-aware VMEM budget.
    while block_b > 8 and needed(block_b) > budget:
        block_b = max(8, _round_up(block_b // 2, 8))

    if block_b >= B:
        block_b = B  # full-dim block is always a legal block shape

    grid = (pl.cdiv(B, block_b),)
    vmem_limit = int(min(budget, max(needed(block_b) + (4 << 20), 16 << 20)))

    def make_call(single_buffer_params):
        param_kw = {}
        if single_buffer_params and hasattr(pl, "Buffered"):
            # Constant index_map -> the panel is never re-fetched; a single
            # buffer halves the resident param footprint (matters at large H).
            param_kw = dict(pipeline_mode=pl.Buffered(1))
        return pl.pallas_call(
            compine_kernel,
            out_shape=jax.ShapeDtypeStruct((B, H), out_dtype),
            grid=grid,
            in_specs=[
                pl.BlockSpec((block_b, IN), lambda i: (i, 0)),          # x tile
                pl.BlockSpec((IN, H2), lambda i: (0, 0), **param_kw),   # [Wg|Wc]
                pl.BlockSpec((1, H2), lambda i: (0, 0), **param_kw),    # [bg|bc]
            ],
            out_specs=pl.BlockSpec((block_b, H), lambda i: (i, 0)),
            compiler_params=pltpu.CompilerParams(
                dimension_semantics=("parallel",),
                vmem_limit_bytes=vmem_limit,
            ),
        )

    try:
        return make_call(True)(x, w_packed, b_packed)
    except Exception:
        # Fallback: default double-buffered params (always-supported path).
        return make_call(False)(x, w_packed, b_packed)


def compine_reference(x, wg, bg, wc, bc):
    g = x @ wg + bg
    c = x @ wc + bc
    return jax.nn.sigmoid(g) * jnp.maximum(c, 0.0)


# --------------------------------------------------------------------------
# Self-test
# --------------------------------------------------------------------------
if __name__ == "__main__":
    hidden_size = 32
    num_size = 4
    in_features = hidden_size * num_size  # 128

    key = jax.random.PRNGKey(0)
    kx, kwg, kbg, kwc, kbc = jax.random.split(key, 5)

    # Deterministic parameter init (mimicking nn.Linear uniform init range).
    bound = 1.0 / (in_features ** 0.5)
    # Stored already transposed: (in_features, hidden_size) == PyTorch weight.T
    wg = jax.random.uniform(kwg, (in_features, hidden_size), jnp.float32, -bound, bound)
    bg = jax.random.uniform(kbg, (hidden_size,), jnp.float32, -bound, bound)
    wc = jax.random.uniform(kwc, (in_features, hidden_size), jnp.float32, -bound, bound)
    bc = jax.random.uniform(kbc, (hidden_size,), jnp.float32, -bound, bound)

    # Pack once at setup (NOT per forward call).
    w_packed, b_packed = pack_compine_params(wg, bg, wc, bc)
    w_packed, b_packed = jax.block_until_ready((w_packed, b_packed))

    # --- Test 1: tiny batch, single tile, tight tolerance -------------------
    batch = 8
    x = jax.random.normal(kx, (batch, in_features), dtype=jnp.float32)
    out = jax.block_until_ready(compine_forward(x, w_packed, b_packed))
    ref = compine_reference(x, wg, bg, wc, bc)
    assert out.shape == (batch, hidden_size)
    assert jnp.allclose(out, ref, atol=1e-5, rtol=1e-5), "f32 mismatch (single tile)"

    # --- Test 2: auto tiling, >=2 grid steps (megacore) with ragged tail ----
    batch2 = 300
    x2 = jax.random.normal(jax.random.PRNGKey(1), (batch2, in_features), dtype=jnp.float32)
    out2 = jax.block_until_ready(compine_forward(x2, w_packed, b_packed))
    ref2 = compine_reference(x2, wg, bg, wc, bc)
    assert out2.shape == (batch2, hidden_size)
    assert jnp.allclose(out2, ref2, atol=1e-5, rtol=1e-5), "f32 mismatch (auto tiles)"

    # --- Test 3: explicit small block_b, multi-step grid, ragged last tile --
    batch3 = 70
    x3 = jax.random.normal(jax.random.PRNGKey(2), (batch3, in_features), dtype=jnp.float32)
    out3 = jax.block_until_ready(compine_forward(x3, w_packed, b_packed, block_b=16))
    ref3 = compine_reference(x3, wg, bg, wc, bc)
    assert out3.shape == (batch3, hidden_size)
    assert jnp.allclose(out3, ref3, atol=1e-5, rtol=1e-5), "f32 mismatch (multi tile)"

    # --- Test 4: optional bf16 output writeback (f32 compute in-kernel) -----
    out4 = jax.block_until_ready(
        compine_forward(x2, w_packed, b_packed, out_dtype=jnp.bfloat16))
    assert out4.shape == (batch2, hidden_size) and out4.dtype == jnp.bfloat16
    assert jnp.allclose(out4.astype(jnp.float32), ref2, atol=3e-2, rtol=3e-2), \
        "bf16 output mismatch"

    print("KERNEL_OK")
</pallas_src>

<mosaic_0001>
module attributes {stable_mosaic.version = 11 : i64} {
  func.func @compine_kernel(%arg0: i32, %arg1: memref<8x128xf32, #tpu.memory_space<vmem>>, %arg2: memref<128x64xf32, #tpu.memory_space<vmem>>, %arg3: memref<1x64xf32, #tpu.memory_space<vmem>>, %arg4: memref<8x32xf32, #tpu.memory_space<vmem>>) attributes {dimension_semantics = [#tpu.dimension_semantics<parallel>], iteration_bounds = array<i64: 1>, scalar_prefetch = 0 : i64, scratch_operands = 0 : i64, tpu.core_type = #tpu.core_type<tc>, window_params = [{transform_indices = @transform_0, window_bounds = array<i64: 8, 128>}, {pipeline_mode = #tpu.pipeline_mode<synchronous>, transform_indices = @transform_1, window_bounds = array<i64: 128, 64>}, {pipeline_mode = #tpu.pipeline_mode<synchronous>, transform_indices = @transform_2, window_bounds = array<i64: 1, 64>}, {transform_indices = @transform_3, window_bounds = array<i64: 8, 32>}]} {
    %c0 = arith.constant 0 : index
    %c0_0 = arith.constant 0 : index
    %0 = vector.load %arg1[%c0, %c0_0] : memref<8x128xf32, #tpu.memory_space<vmem>>, vector<8x128xf32>
    %c0_1 = arith.constant 0 : index
    %c0_2 = arith.constant 0 : index
    %1 = vector.load %arg2[%c0_1, %c0_2] : memref<128x64xf32, #tpu.memory_space<vmem>>, vector<128x64xf32>
    %cst = arith.constant dense<0.000000e+00> : vector<8x64xf32>
    %2 = tpu.matmul %0, %1, %cst {dimension_numbers = #tpu.dot_dimension_numbers<[1], [0], [0], [1], [0, 0, 1, 1], [], []>} : vector<8x128xf32>, vector<128x64xf32>, vector<8x64xf32> -> vector<8x64xf32>
    %c0_3 = arith.constant 0 : index
    %c0_4 = arith.constant 0 : index
    %3 = vector.load %arg3[%c0_3, %c0_4] : memref<1x64xf32, #tpu.memory_space<vmem>>, vector<1x64xf32>
    %4 = vector.broadcast %3 : vector<1x64xf32> to vector<8x64xf32>
    %5 = arith.addf %2, %4 : vector<8x64xf32>
    %6 = vector.extract_strided_slice %5 {offsets = [0, 0], sizes = [8, 32], strides = [1, 1]} : vector<8x64xf32> to vector<8x32xf32>
    %7 = vector.extract_strided_slice %5 {offsets = [0, 32], sizes = [8, 32], strides = [1, 1]} : vector<8x64xf32> to vector<8x32xf32>
    %8 = arith.negf %6 : vector<8x32xf32>
    %9 = math.exp %8 : vector<8x32xf32>
    %cst_5 = arith.constant 1.000000e+00 : f32
    %10 = vector.broadcast %cst_5 : f32 to vector<8x32xf32>
    %11 = arith.addf %10, %9 : vector<8x32xf32>
    %12 = arith.divf %10, %11 : vector<8x32xf32>
    %cst_6 = arith.constant 0.000000e+00 : f32
    %13 = vector.broadcast %cst_6 : f32 to vector<8x32xf32>
    %14 = arith.maximumf %7, %13 : vector<8x32xf32>
    %15 = arith.mulf %12, %14 : vector<8x32xf32>
    %c0_7 = arith.constant 0 : index
    %c0_8 = arith.constant 0 : index
    %16 = vector.load %arg4[%c0_7, %c0_8] : memref<8x32xf32, #tpu.memory_space<vmem>>, vector<8x32xf32>
    tpu.vector_store %arg4[%c0_7, %c0_8], %15 {strides = array<i32>} : memref<8x32xf32, #tpu.memory_space<vmem>>, vector<8x32xf32>,
    return
  }
  func.func @transform_0(%arg0: i32) -> (i32, i32) {
    %c0_i32 = arith.constant 0 : i32
    %c0_i32_0 = arith.constant 0 : i32
    return %arg0, %c0_i32 : i32, i32
  }
  func.func @transform_1(%arg0: i32) -> (i32, i32) {
    %c0_i32 = arith.constant 0 : i32
    %c0_i32_0 = arith.constant 0 : i32
    %c0_i32_1 = arith.constant 0 : i32
    return %c0_i32, %c0_i32_0 : i32, i32
  }
  func.func @transform_2(%arg0: i32) -> (i32, i32) {
    %c0_i32 = arith.constant 0 : i32
    %c0_i32_0 = arith.constant 0 : i32
    %c0_i32_1 = arith.constant 0 : i32
    return %c0_i32, %c0_i32_0 : i32, i32
  }
  func.func @transform_3(%arg0: i32) -> (i32, i32) {
    %c0_i32 = arith.constant 0 : i32
    %c0_i32_0 = arith.constant 0 : i32
    return %arg0, %c0_i32 : i32, i32
  }
}

module attributes {stable_mosaic.version = 11 : i64} {
  func.func @compine_kernel(%arg0: i32, %arg1: memref<8x128xf32, #tpu.memory_space<vmem>>, %arg2: memref<128x64xf32, #tpu.memory_space<vmem>>, %arg3: memref<1x64xf32, #tpu.memory_space<vmem>>, %arg4: memref<8x32xf32, #tpu.memory_space<vmem>>) attributes {dimension_semantics = [#tpu.dimension_semantics<parallel>], iteration_bounds = array<i64: 1>, scalar_prefetch = 0 : i64, scratch_operands = 0 : i64, tpu.core_type = #tpu.core_type<tc>, window_params = [{transform_indices = @transform_0, window_bounds = array<i64: 8, 128>}, {pipeline_mode = #tpu.pipeline_mode<synchronous>, transform_indices = @transform_1, window_bounds = array<i64: 128, 64>}, {pipeline_mode = #tpu.pipeline_mode<synchronous>, transform_indices = @transform_2, window_bounds = array<i64: 1, 64>}, {transform_indices = @transform_3, window_bounds = array<i64: 8, 32>}]} {
    %c0 = arith.constant 0 : index
    %c0_0 = arith.constant 0 : index
    %0 = vector.load %arg1[%c0, %c0_0] : memref<8x128xf32, #tpu.memory_space<vmem>>, vector<8x128xf32>
    %c0_1 = arith.constant 0 : index
    %c0_2 = arith.constant 0 : index
    %1 = vector.load %arg2[%c0_1, %c0_2] : memref<128x64xf32, #tpu.memory_space<vmem>>, vector<128x64xf32>
    %cst = arith.constant dense<0.000000e+00> : vector<8x64xf32>
    %2 = tpu.matmul %0, %1, %cst {dimension_numbers = #tpu.dot_dimension_numbers<[1], [0], [0], [1], [0, 0, 1, 1], [], []>} : vector<8x128xf32>, vector<128x64xf32>, vector<8x64xf32> -> vector<8x64xf32>
    %c0_3 = arith.constant 0 : index
    %c0_4 = arith.constant 0 : index
    %3 = vector.load %arg3[%c0_3, %c0_4] : memref<1x64xf32, #tpu.memory_space<vmem>>, vector<1x64xf32>
    %4 = vector.broadcast %3 : vector<1x64xf32> to vector<8x64xf32>
    %5 = arith.addf %2, %4 : vector<8x64xf32>
    %6 = vector.extract_strided_slice %5 {offsets = [0, 0], sizes = [8, 32], strides = [1, 1]} : vector<8x64xf32> to vector<8x32xf32>
    %7 = vector.extract_strided_slice %5 {offsets = [0, 32], sizes = [8, 32], strides = [1, 1]} : vector<8x64xf32> to vector<8x32xf32>
    %8 = arith.negf %6 : vector<8x32xf32>
    %9 = math.exp %8 : vector<8x32xf32>
    %cst_5 = arith.constant 1.000000e+00 : f32
    %10 = vector.broadcast %cst_5 : f32 to vector<8x32xf32>
    %11 = arith.addf %10, %9 : vector<8x32xf32>
    %12 = arith.divf %10, %11 : vector<8x32xf32>
    %cst_6 = arith.constant 0.000000e+00 : f32
    %13 = vector.broadcast %cst_6 : f32 to vector<8x32xf32>
    %14 = arith.maximumf %7, %13 : vector<8x32xf32>
    %15 = arith.mulf %12, %14 : vector<8x32xf32>
    %c0_7 = arith.constant 0 : index
    %c0_8 = arith.constant 0 : index
    %16 = vector.load %arg4[%c0_7, %c0_8] : memref<8x32xf32, #tpu.memory_space<vmem>>, vector<8x32xf32>
    tpu.vector_store %arg4[%c0_7, %c0_8], %15 {strides = array<i32>} : memref<8x32xf32, #tpu.memory_space<vmem>>, vector<8x32xf32>,
    return
  }
  func.func @transform_0(%arg0: i32) -> (i32, i32) {
    %c0_i32 = arith.constant 0 : i32
    %c0_i32_0 = arith.constant 0 : i32
    return %arg0, %c0_i32 : i32, i32
  }
  func.func @transform_1(%arg0: i32) -> (i32, i32) {
    %c0_i32 = arith.constant 0 : i32
    %c0_i32_0 = arith.constant 0 : i32
    %c0_i32_1 = arith.constant 0 : i32
    return %c0_i32, %c0_i32_0 : i32, i32
  }
  func.func @transform_2(%arg0: i32) -> (i32, i32) {
    %c0_i32 = arith.constant 0 : i32
    %c0_i32_0 = arith.constant 0 : i32
    %c0_i32_1 = arith.constant 0 : i32
    return %c0_i32, %c0_i32_0 : i32, i32
  }
  func.func @transform_3(%arg0: i32) -> (i32, i32) {
    %c0_i32 = arith.constant 0 : i32
    %c0_i32_0 = arith.constant 0 : i32
    return %arg0, %c0_i32 : i32, i32
  }
}

</mosaic_0001>

<llo_original>
// kernel: tpu_custom_call.1
$region0: #{tpu_custom_call.1}
  #allocation0 [shape = 'u32[]', space=smem, size = 0x4, offset = 0x4, fixed_abs, tag = 'smem constant byte address 0x4 - core index']
  #allocation1 [shape = 'u32[144,128]{1,0:T(1,128)}', space=vmem, size = 0x12000, scoped, tag = 'internal scratch']
  %s0 = inlined_call_operand.vmem [shape: f32[8,128], index: 0, kind: input, shape index: {}]
  %s1 = inlined_call_operand.vmem [shape: f32[128,64], index: 1, kind: input, shape index: {}]
  %s2 = inlined_call_operand.vmem [shape: f32[1,64], index: 2, kind: input, shape index: {}]
  %s3 = inlined_call_operand.hbm [shape: f32[8,32], index: 3, kind: output, shape index: {}]
  %s4 = sld [smem:[#allocation0]]
  $region22: #{tpu_custom_call.1} parent=0
    _
  %s6 = ssub.s32 1, %s4
  %s7 = scalar_select 0, %s6, %s4
  $region1: #{tpu_custom_call.1} parent=0
    #allocation2 [shape = 'u8[4096]{0}', space=vmem, size = 0x1000, scoped, tag = 'output window, operand 0, single buffered']
    #allocation3 [shape = 's32[1]{0}', space=sflag, size = 0x4, scoped, tag = 'scoped memory for tpu_custom_call.1']
    %8 = vsyncpa [#allocation3], 0
    // Predicated region
    $region2: #{tpu_custom_call.1} parent=1 // pred_check
      _
    $region3: #{tpu_custom_call.1} parent=1 // pred_check_branch
      %10 = sbr.rel (0) target = $region5
    $region4: #{tpu_custom_call.1} parent=1 // pred_region
      _
    $region5: #{tpu_custom_call.1} parent=1 // pred_fallthru
      _
    // Predicated region
    $region6: #{tpu_custom_call.1} parent=1 // pred_check
      _
    $region7: #{tpu_custom_call.1} parent=1 // pred_check_branch
      %12 = sbr.rel (0) target = $region9
    $region8: #{tpu_custom_call.1} parent=1 // pred_region
      _
    $region9: #{tpu_custom_call.1} parent=1 // pred_fallthru
      _
    // Predicated region
    $region10: #{tpu_custom_call.1} parent=1 // pred_check
      _
    $region11: #{tpu_custom_call.1} parent=1 // pred_check_branch
      %14 = sbr.rel (0) target = $region13
    $region12: #{tpu_custom_call.1} parent=1 // pred_region
      _
    $region13: #{tpu_custom_call.1} parent=1 // pred_fallthru
      _
    %v15 = vld [vmem:[%s0] sm:$0xff]
    %v16 = vld [vmem:[%s1] sm:$0xff]
    %v17 = vld [vmem:[%s1 + $0x8] sm:$0xff]
    %v18 = vld [vmem:[%s1 + $0x10] sm:$0xff]
    %v19 = vld [vmem:[%s1 + $0x18] sm:$0xff]
    %v20 = vld [vmem:[%s1 + $0x20] sm:$0xff]
    %v21 = vld [vmem:[%s1 + $0x28] sm:$0xff]
    %v22 = vld [vmem:[%s1 + $0x30] sm:$0xff]
    %v23 = vld [vmem:[%s1 + $0x38] sm:$0xff]
    %v24 = vld [vmem:[%s1 + $0x40] sm:$0xff]
    %v25 = vld [vmem:[%s1 + $0x48] sm:$0xff]
    %v26 = vld [vmem:[%s1 + $0x50] sm:$0xff]
    %v27 = vld [vmem:[%s1 + $0x58] sm:$0xff]
    %v28 = vld [vmem:[%s1 + $0x60] sm:$0xff]
    %v29 = vld [vmem:[%s1 + $0x68] sm:$0xff]
    %v30 = vld [vmem:[%s1 + $0x70] sm:$0xff]
    %v31 = vld [vmem:[%s1 + $0x78] sm:$0xff]
    %v32 = vld [vmem:[%s2] sm:$0x1]
    %v34 = vlaneseq
    %v35 = vshrl.u32 %v34, 7
    %v36 = vsub.s32 0, %v35
    %v37 = vrot.slane %v32, %v36
    %39 = vmatprep.subr.mxu0 0.0
    %40 = vmatpush1.msra.mxu0 %v31
    %41 = vmatprep.subr.mxu0 0.0
    %42 = vmatpush1.msra.mxu0 %v30
    %43 = vmatprep.subr.mxu0 0.0
    %44 = vmatpush1.msra.mxu0 %v29
    %45 = vmatprep.subr.mxu0 0.0
    %46 = vmatpush1.msra.mxu0 %v28
    %47 = vmatprep.subr.mxu0 0.0
    %48 = vmatpush1.msra.mxu0 %v27
    %49 = vmatprep.subr.mxu0 0.0
    %50 = vmatpush1.msra.mxu0 %v26
    %51 = vmatprep.subr.mxu0 0.0
    %52 = vmatpush1.msra.mxu0 %v25
    %53 = vmatprep.subr.mxu0 0.0
    %54 = vmatpush1.msra.mxu0 %v24
    %55 = vmatprep.subr.mxu0 0.0
    %56 = vmatpush1.msra.mxu0 %v23
    %57 = vmatprep.subr.mxu0 0.0
    %58 = vmatpush1.msra.mxu0 %v22
    %59 = vmatprep.subr.mxu0 0.0
    %60 = vmatpush1.msra.mxu0 %v21
    %61 = vmatprep.subr.mxu0 0.0
    %62 = vmatpush1.msra.mxu0 %v20
    %63 = vmatprep.subr.mxu0 0.0
    %64 = vmatpush1.msra.mxu0 %v19
    %65 = vmatprep.subr.mxu0 0.0
    %66 = vmatpush1.msra.mxu0 %v18
    %67 = vmatprep.subr.mxu0 0.0
    %68 = vmatpush1.msra.mxu0 %v17
    %69 = vmatprep.subr.mxu0 0.0
    %70 = vmatpush1.msra.mxu0 %v16
    %71 = vmatprep.subr.mxu0 0.0
    %72 = vmatpush2.msra.mxu0 0.0
    %73 = vmatprep.subr.mxu0 0.0
    %74 = vmatpush2.msra.mxu0 0.0
    %75 = vmatprep.subr.mxu0 0.0
    %76 = vmatpush2.msra.mxu0 0.0
    %77 = vmatprep.subr.mxu0 0.0
    %78 = vmatpush2.msra.mxu0 0.0
    %79 = vmatprep.subr.mxu0 0.0
    %80 = vmatpush2.msra.mxu0 0.0
    %81 = vmatprep.subr.mxu0 0.0
    %82 = vmatpush2.msra.mxu0 0.0
    %83 = vmatprep.subr.mxu0 0.0
    %84 = vmatpush2.msra.mxu0 0.0
    %85 = vmatprep.subr.mxu0 0.0
    %86 = vmatpush2.msra.mxu0 0.0
    %87 = vmatprep.subr.mxu0 0.0
    %88 = vmatpush2.msra.mxu0 0.0
    %89 = vmatprep.subr.mxu0 0.0
    %90 = vmatpush2.msra.mxu0 0.0
    %91 = vmatprep.subr.mxu0 0.0
    %92 = vmatpush2.msra.mxu0 0.0
    %93 = vmatprep.subr.mxu0 0.0
    %94 = vmatpush2.msra.mxu0 0.0
    %95 = vmatprep.subr.mxu0 0.0
    %96 = vmatpush2.msra.mxu0 0.0
    %97 = vmatprep.subr.mxu0 0.0
    %98 = vmatpush2.msra.mxu0 0.0
    %99 = vmatprep.subr.mxu0 0.0
    %100 = vmatpush2.msra.mxu0 0.0
    %101 = vmatprep.subr.mxu0 0.0
    %102 = vmatpush2.msra.mxu0 0.0
    %103 = vmatprep.mubr.f32.mxu0 0.0
    %104 = vmatmul.mubr.f32.gmra.mxu0 %v15
    %v105 = vpop.f32.mrf.mxu0
    %v106 = vadd.f32 %v37, %v105
    %v107 = vpop.f32.mrf.mxu0
    %108 = vdwg.mxu0
    %v109 = vxor.u32 %v106, 2147483648
    %v110 = vmul.f32 %v109, 1.442695
    %v111 = vpow.pop %v110
    %v112 = vadd.f32 %v111, 1.0
    %v113 = vrcp.pop %v112
    %v114 = vmul.f32 1.0, %v113
    %v115 = vmax.f32 %v106, 0.0
    %117 = vrot.lane.b32.xlu0 %v115, 96
    %v118 = vpop.permute.xlu0 %117
    %v120 = vmul.f32 %v114, %v118
    %vm121 = vcmask 261120
    %122 = vst.msk [vmem:[#allocation2] sm:$0xff] %vm121, %v120
    // Predicated region
    $region14: #{tpu_custom_call.1} parent=1 // pred_check
      _
    $region15: #{tpu_custom_call.1} parent=1 // pred_check_branch
      %124 = sbr.rel (0) target = $region17
    $region16: #{tpu_custom_call.1} parent=1 // pred_region
      %s126 = ssub.s32 128, 128
      %127 = vsyncadd [#allocation3], %s126
      %s129 = sshll.u32 [#allocation2], 4
      %s130 = int_to_ptr.vmem [resolvable:$true] %s129
      %132 = dma.vmem_to_hbm [thread:$0]  %s130, 128, %s3, [#allocation3]
    $region17: #{tpu_custom_call.1} parent=1 // pred_fallthru
      _
    // Predicated region
    $region18: #{tpu_custom_call.1} parent=1 // pred_check
      _
    $region19: #{tpu_custom_call.1} parent=1 // pred_check_branch
      %134 = sbr.rel (0) target = $region21
    $region20: #{tpu_custom_call.1} parent=1 // pred_region
      %135 = dma.done [#allocation3], 128
    $region21: #{tpu_custom_call.1} parent=1 // pred_fallthru
      _
    %136 = vsyncpa [#allocation3], 1

// kernel: tpu_custom_call.1
$region0: #{tpu_custom_call.1}
  #allocation0 [shape = 'u32[]', space=smem, size = 0x4, offset = 0x4, fixed_abs, tag = 'smem constant byte address 0x4 - core index']
  #allocation1 [shape = 'u32[144,128]{1,0:T(1,128)}', space=vmem, size = 0x12000, scoped, tag = 'internal scratch']
  %s0 = inlined_call_operand.vmem [shape: f32[8,128], index: 0, kind: input, shape index: {}]
  %s1 = inlined_call_operand.vmem [shape: f32[128,64], index: 1, kind: input, shape index: {}]
  %s2 = inlined_call_operand.vmem [shape: f32[1,64], index: 2, kind: input, shape index: {}]
  %s3 = inlined_call_operand.hbm [shape: f32[8,32], index: 3, kind: output, shape index: {}]
  %s4 = sld [smem:[#allocation0]]
  $region22: #{tpu_custom_call.1} parent=0
    _
  %s6 = ssub.s32 1, %s4
  %s7 = scalar_select 0, %s6, %s4
  $region1: #{tpu_custom_call.1} parent=0
    #allocation2 [shape = 'u8[4096]{0}', space=vmem, size = 0x1000, scoped, tag = 'output window, operand 0, single buffered']
    #allocation3 [shape = 's32[1]{0}', space=sflag, size = 0x4, scoped, tag = 'scoped memory for tpu_custom_call.1']
    %8 = vsyncpa [#allocation3], 0
    // Predicated region
    $region2: #{tpu_custom_call.1} parent=1 // pred_check
      _
    $region3: #{tpu_custom_call.1} parent=1 // pred_check_branch
      %10 = sbr.rel (0) target = $region5
    $region4: #{tpu_custom_call.1} parent=1 // pred_region
      _
    $region5: #{tpu_custom_call.1} parent=1 // pred_fallthru
      _
    // Predicated region
    $region6: #{tpu_custom_call.1} parent=1 // pred_check
      _
    $region7: #{tpu_custom_call.1} parent=1 // pred_check_branch
      %12 = sbr.rel (0) target = $region9
    $region8: #{tpu_custom_call.1} parent=1 // pred_region
      _
    $region9: #{tpu_custom_call.1} parent=1 // pred_fallthru
      _
    // Predicated region
    $region10: #{tpu_custom_call.1} parent=1 // pred_check
      _
    $region11: #{tpu_custom_call.1} parent=1 // pred_check_branch
      %14 = sbr.rel (0) target = $region13
    $region12: #{tpu_custom_call.1} parent=1 // pred_region
      _
    $region13: #{tpu_custom_call.1} parent=1 // pred_fallthru
      _
    %v15 = vld [vmem:[%s0] sm:$0xff]
    %v16 = vld [vmem:[%s1] sm:$0xff]
    %v17 = vld [vmem:[%s1 + $0x8] sm:$0xff]
    %v18 = vld [vmem:[%s1 + $0x10] sm:$0xff]
    %v19 = vld [vmem:[%s1 + $0x18] sm:$0xff]
    %v20 = vld [vmem:[%s1 + $0x20] sm:$0xff]
    %v21 = vld [vmem:[%s1 + $0x28] sm:$0xff]
    %v22 = vld [vmem:[%s1 + $0x30] sm:$0xff]
    %v23 = vld [vmem:[%s1 + $0x38] sm:$0xff]
    %v24 = vld [vmem:[%s1 + $0x40] sm:$0xff]
    %v25 = vld [vmem:[%s1 + $0x48] sm:$0xff]
    %v26 = vld [vmem:[%s1 + $0x50] sm:$0xff]
    %v27 = vld [vmem:[%s1 + $0x58] sm:$0xff]
    %v28 = vld [vmem:[%s1 + $0x60] sm:$0xff]
    %v29 = vld [vmem:[%s1 + $0x68] sm:$0xff]
    %v30 = vld [vmem:[%s1 + $0x70] sm:$0xff]
    %v31 = vld [vmem:[%s1 + $0x78] sm:$0xff]
    %v32 = vld [vmem:[%s2] sm:$0x1]
    %v34 = vlaneseq
    %v35 = vshrl.u32 %v34, 7
    %v36 = vsub.s32 0, %v35
    %v37 = vrot.slane %v32, %v36
    %39 = vmatprep.subr.mxu0 0.0
    %40 = vmatpush1.msra.mxu0 %v31
    %41 = vmatprep.subr.mxu0 0.0
    %42 = vmatpush1.msra.mxu0 %v30
    %43 = vmatprep.subr.mxu0 0.0
    %44 = vmatpush1.msra.mxu0 %v29
    %45 = vmatprep.subr.mxu0 0.0
    %46 = vmatpush1.msra.mxu0 %v28
    %47 = vmatprep.subr.mxu0 0.0
    %48 = vmatpush1.msra.mxu0 %v27
    %49 = vmatprep.subr.mxu0 0.0
    %50 = vmatpush1.msra.mxu0 %v26
    %51 = vmatprep.subr.mxu0 0.0
    %52 = vmatpush1.msra.mxu0 %v25
    %53 = vmatprep.subr.mxu0 0.0
    %54 = vmatpush1.msra.mxu0 %v24
    %55 = vmatprep.subr.mxu0 0.0
    %56 = vmatpush1.msra.mxu0 %v23
    %57 = vmatprep.subr.mxu0 0.0
    %58 = vmatpush1.msra.mxu0 %v22
    %59 = vmatprep.subr.mxu0 0.0
    %60 = vmatpush1.msra.mxu0 %v21
    %61 = vmatprep.subr.mxu0 0.0
    %62 = vmatpush1.msra.mxu0 %v20
    %63 = vmatprep.subr.mxu0 0.0
    %64 = vmatpush1.msra.mxu0 %v19
    %65 = vmatprep.subr.mxu0 0.0
    %66 = vmatpush1.msra.mxu0 %v18
    %67 = vmatprep.subr.mxu0 0.0
    %68 = vmatpush1.msra.mxu0 %v17
    %69 = vmatprep.subr.mxu0 0.0
    %70 = vmatpush1.msra.mxu0 %v16
    %71 = vmatprep.subr.mxu0 0.0
    %72 = vmatpush2.msra.mxu0 0.0
    %73 = vmatprep.subr.mxu0 0.0
    %74 = vmatpush2.msra.mxu0 0.0
    %75 = vmatprep.subr.mxu0 0.0
    %76 = vmatpush2.msra.mxu0 0.0
    %77 = vmatprep.subr.mxu0 0.0
    %78 = vmatpush2.msra.mxu0 0.0
    %79 = vmatprep.subr.mxu0 0.0
    %80 = vmatpush2.msra.mxu0 0.0
    %81 = vmatprep.subr.mxu0 0.0
    %82 = vmatpush2.msra.mxu0 0.0
    %83 = vmatprep.subr.mxu0 0.0
    %84 = vmatpush2.msra.mxu0 0.0
    %85 = vmatprep.subr.mxu0 0.0
    %86 = vmatpush2.msra.mxu0 0.0
    %87 = vmatprep.subr.mxu0 0.0
    %88 = vmatpush2.msra.mxu0 0.0
    %89 = vmatprep.subr.mxu0 0.0
    %90 = vmatpush2.msra.mxu0 0.0
    %91 = vmatprep.subr.mxu0 0.0
    %92 = vmatpush2.msra.mxu0 0.0
    %93 = vmatprep.subr.mxu0 0.0
    %94 = vmatpush2.msra.mxu0 0.0
    %95 = vmatprep.subr.mxu0 0.0
    %96 = vmatpush2.msra.mxu0 0.0
    %97 = vmatprep.subr.mxu0 0.0
    %98 = vmatpush2.msra.mxu0 0.0
    %99 = vmatprep.subr.mxu0 0.0
    %100 = vmatpush2.msra.mxu0 0.0
    %101 = vmatprep.subr.mxu0 0.0
    %102 = vmatpush2.msra.mxu0 0.0
    %103 = vmatprep.mubr.f32.mxu0 0.0
    %104 = vmatmul.mubr.f32.gmra.mxu0 %v15
    %v105 = vpop.f32.mrf.mxu0
    %v106 = vadd.f32 %v37, %v105
    %v107 = vpop.f32.mrf.mxu0
    %108 = vdwg.mxu0
    %v109 = vxor.u32 %v106, 2147483648
    %v110 = vmul.f32 %v109, 1.442695
    %v111 = vpow.pop %v110
    %v112 = vadd.f32 %v111, 1.0
    %v113 = vrcp.pop %v112
    %v114 = vmul.f32 1.0, %v113
    %v115 = vmax.f32 %v106, 0.0
    %117 = vrot.lane.b32.xlu0 %v115, 96
    %v118 = vpop.permute.xlu0 %117
    %v120 = vmul.f32 %v114, %v118
    %vm121 = vcmask 261120
    %122 = vst.msk [vmem:[#allocation2] sm:$0xff] %vm121, %v120
    // Predicated region
    $region14: #{tpu_custom_call.1} parent=1 // pred_check
      _
    $region15: #{tpu_custom_call.1} parent=1 // pred_check_branch
      %124 = sbr.rel (0) target = $region17
    $region16: #{tpu_custom_call.1} parent=1 // pred_region
      %s126 = ssub.s32 128, 128
      %127 = vsyncadd [#allocation3], %s126
      %s129 = sshll.u32 [#allocation2], 4
      %s130 = int_to_ptr.vmem [resolvable:$true] %s129
      %132 = dma.vmem_to_hbm [thread:$0]  %s130, 128, %s3, [#allocation3]
    $region17: #{tpu_custom_call.1} parent=1 // pred_fallthru
      _
    // Predicated region
    $region18: #{tpu_custom_call.1} parent=1 // pred_check
      _
    $region19: #{tpu_custom_call.1} parent=1 // pred_check_branch
      %134 = sbr.rel (0) target = $region21
    $region20: #{tpu_custom_call.1} parent=1 // pred_region
      %135 = dma.done [#allocation3], 128
    $region21: #{tpu_custom_call.1} parent=1 // pred_fallthru
      _
    %136 = vsyncpa [#allocation3], 1

</llo_original>
